<compile_context>
chip_gen: v5e
topology: v5e:2x2
jax: 0.10.0
libtpu: 0.0.40
codegen_flags: <defaults>
</compile_context>

<pallas_src>
import functools

import jax
import jax.numpy as jnp
from jax.experimental import pallas as pl
from jax.experimental.pallas import tpu as pltpu


LANE = 128       # vreg lane width (batch tile granularity)
SUBLANE = 8      # vreg sublane width (f32) -> hidden/action padding granularity
NEG_MASK = jnp.float32(-1e30)


def _round_up(n, m):
    return ((n + m - 1) // m) * m


def _cdiv(a, b):
    return -(-a // b)


def policy_net_kernel(x_ref, w1_ref, b1_ref, w2_ref, b2_ref, out_ref):
    # x_ref: (S, bt)  w1: (H8, S)  b1: (H8, 1)  w2: (A8, H8)  b2: (A8, 1)
    x = x_ref[...]

    # fc1 + bias + ReLU  (MXU matmul, f32 accumulate; batch on lanes)
    h = jnp.dot(w1_ref[...], x, preferred_element_type=jnp.float32)     # (H8, bt)
    h = jnp.maximum(h + b1_ref[...], 0.0)

    # fc2 + bias.  Padded action rows have zero weights and b2 = -1e30, so the
    # softmax mask is already baked in (no iota/where needed).
    logits = jnp.dot(w2_ref[...], h, preferred_element_type=jnp.float32)  # (A8, bt)
    logits = logits + b2_ref[...]

    # Numerically stable softmax over the action (sublane) axis.
    m = jnp.max(logits, axis=0, keepdims=True)       # (1, bt) cross-sublane (XLU)
    e = jnp.exp(logits - m)                           # padded rows underflow to 0
    denom = jnp.sum(e, axis=0, keepdims=True)
    # Exact division: PPO consumes probability ratios / log-probs.
    out_ref[...] = (e / denom).astype(out_ref.dtype)  # (A8, bt) lane-dense store


def policy_net_forward(x, params, *, action_dim, block_batch=8192,
                       out_dtype=jnp.float32, return_transposed=False):
    """x: (B, state_dim) f32.  params = (w1, b1, w2, b2) in kernel layout
    (see init_params).  Returns (B, action_dim) probabilities, or the raw
    padded (A8, B_pad) block if return_transposed=True (rows 0:action_dim and
    columns 0:B are the real data)."""
    w1, b1, w2, b2 = params
    B, S = x.shape
    H8, S_w = w1.shape
    A8 = w2.shape[0]
    assert S_w == S and w2.shape[1] == H8
    assert H8 % SUBLANE == 0 and A8 % SUBLANE == 0

    # ---- Batch-tile selection ------------------------------------------------
    # Big tiles amortize the ~0.35us/step grid overhead; keep an even >=2-step
    # grid whenever B spans >=2 lane groups so ("parallel",) can shard batch
    # tiles across both TensorCores on v7x (harmless on single-TC v5e/v6e).
    block_batch = max(LANE, _round_up(block_batch, LANE))
    B_lane = _round_up(B, LANE)
    if B_lane // LANE <= 1:
        bt = LANE
    else:
        n_tiles = max(2, 2 * _cdiv(B_lane, 2 * block_batch))
        bt = _round_up(_cdiv(B_lane, n_tiles), LANE)
    B_pad = _round_up(B, bt)
    grid = (B_pad // bt,)

    # Batch-in-lanes layout: transpose + zero-pad the batch (lane) axis.
    x_t = x.T                                        # (S, B)
    if B_pad != B:
        x_t = jnp.pad(x_t, ((0, 0), (0, B_pad - B)))

    out = pl.pallas_call(
        policy_net_kernel,
        out_shape=jax.ShapeDtypeStruct((A8, B_pad), out_dtype),
        grid=grid,
        in_specs=[
            pl.BlockSpec((S, bt), lambda i: (0, i)),     # x: tiled over batch lanes
            pl.BlockSpec((H8, S), lambda i: (0, 0)),     # w1: resident
            pl.BlockSpec((H8, 1), lambda i: (0, 0)),     # b1: resident
            pl.BlockSpec((A8, H8), lambda i: (0, 0)),    # w2: resident
            pl.BlockSpec((A8, 1), lambda i: (0, 0)),     # b2: resident (mask baked in)
        ],
        out_specs=pl.BlockSpec((A8, bt), lambda i: (0, i)),
        compiler_params=pltpu.CompilerParams(
            dimension_semantics=("parallel",)),
    )(x_t, w1, b1, w2, b2)

    if return_transposed:
        return out                                   # avoid the extra HBM pass
    # Row slice (contiguous) + small transpose back to PyTorch's (B, A) layout.
    return out[:action_dim, :B].T


def init_params(key, state_dim, hidden_dim, action_dim):
    """PyTorch-style nn.Linear init (U[-1/sqrt(fan_in), 1/sqrt(fan_in)]).
    Returns (logical PyTorch-layout params, kernel-layout padded params).
    Kernel layout keeps PyTorch's (out_features, in_features) weight shape,
    pads hidden/action dims to a multiple of 8 (sublanes) and bakes the
    softmax mask into the padded rows of b2."""
    k1, k2, k3, k4 = jax.random.split(key, 4)
    lim1 = 1.0 / (state_dim ** 0.5)
    lim2 = 1.0 / (hidden_dim ** 0.5)
    w1 = jax.random.uniform(k1, (hidden_dim, state_dim), jnp.float32, -lim1, lim1)
    b1 = jax.random.uniform(k2, (hidden_dim,), jnp.float32, -lim1, lim1)
    w2 = jax.random.uniform(k3, (action_dim, hidden_dim), jnp.float32, -lim2, lim2)
    b2 = jax.random.uniform(k4, (action_dim,), jnp.float32, -lim2, lim2)

    H8 = _round_up(hidden_dim, SUBLANE)
    A8 = _round_up(action_dim, SUBLANE)
    # Padded hidden rows: relu(0 + 0) = 0 and feed zero w2 columns -> inert.
    w1p = jnp.pad(w1, ((0, H8 - hidden_dim), (0, 0)))                      # (H8, S)
    b1p = jnp.pad(b1, (0, H8 - hidden_dim)).reshape(H8, 1)                 # (H8, 1)
    w2p = jnp.pad(w2, ((0, A8 - action_dim), (0, H8 - hidden_dim)))        # (A8, H8)
    # Padded action rows: logits = 0*h + (-1e30) -> exp underflows to exactly 0.
    b2p = jnp.concatenate(
        [b2, jnp.full((A8 - action_dim,), NEG_MASK, jnp.float32)]).reshape(A8, 1)
    return (w1, b1, w2, b2), (w1p, b1p, w2p, b2p)


def _reference(x, w1, b1, w2, b2):
    """Pure-JAX reference in PyTorch convention (y = x @ W.T + b)."""
    h = jnp.maximum(x @ w1.T + b1, 0.0)
    return jax.nn.softmax(h @ w2.T + b2, axis=-1)


if __name__ == "__main__":
    state_dim, hidden_dim, action_dim = 4, 32, 4

    key = jax.random.PRNGKey(0)
    kx, kp, kb = jax.random.split(key, 3)
    logical, kparams = init_params(kp, state_dim, hidden_dim, action_dim)

    # --- Small-batch correctness check (exact f32 path), matches PyTorch spec.
    batch = 2
    x = jax.random.normal(kx, (batch, state_dim), jnp.float32)
    out = policy_net_forward(x, kparams, action_dim=action_dim)
    out = jax.block_until_ready(out)
    ref = _reference(x, *logical)
    assert out.shape == (batch, action_dim)
    assert jnp.allclose(out, ref, atol=1e-5, rtol=1e-4)
    assert jnp.allclose(jnp.sum(out, axis=-1), 1.0, atol=1e-5)

    # --- Rollout-sized batch: exercises batch padding and a >=2-step grid
    # (dimension_semantics=("parallel",) -> both TensorCores on v7x).
    big_batch = 1000
    xb = jax.random.normal(kb, (big_batch, state_dim), jnp.float32)
    out_big = jax.block_until_ready(
        policy_net_forward(xb, kparams, action_dim=action_dim))
    ref_big = _reference(xb, *logical)
    assert out_big.shape == (big_batch, action_dim)
    assert jnp.allclose(out_big, ref_big, atol=1e-5, rtol=1e-4)

    # --- Optional bf16 *output* (halves the dominant HBM writeback stream;
    # mainly a v5e win).  Probabilities only bf16-accurate, so PPO loss paths
    # should keep the default f32.
    out_bf16 = jax.block_until_ready(
        policy_net_forward(xb, kparams, action_dim=action_dim,
                           out_dtype=jnp.bfloat16))
    assert out_bf16.dtype == jnp.bfloat16
    assert jnp.allclose(out_bf16.astype(jnp.float32), ref_big, atol=1e-2, rtol=1e-2)
    assert jnp.allclose(jnp.sum(out_bf16.astype(jnp.float32), axis=-1), 1.0,
                        atol=2e-2)

    print("KERNEL_OK")
</pallas_src>

<mosaic_0001>
module attributes {stable_mosaic.version = 11 : i64} {
  func.func @policy_net_kernel(%arg0: i32, %arg1: memref<4x128xf32, #tpu.memory_space<vmem>>, %arg2: memref<32x4xf32, #tpu.memory_space<vmem>>, %arg3: memref<32x1xf32, #tpu.memory_space<vmem>>, %arg4: memref<8x32xf32, #tpu.memory_space<vmem>>, %arg5: memref<8x1xf32, #tpu.memory_space<vmem>>, %arg6: memref<8x128xf32, #tpu.memory_space<vmem>>) attributes {dimension_semantics = [#tpu.dimension_semantics<parallel>], iteration_bounds = array<i64: 1>, scalar_prefetch = 0 : i64, scratch_operands = 0 : i64, tpu.core_type = #tpu.core_type<tc>, window_params = [{transform_indices = @transform_0, window_bounds = array<i64: 4, 128>}, {pipeline_mode = #tpu.pipeline_mode<synchronous>, transform_indices = @transform_1, window_bounds = array<i64: 32, 4>}, {pipeline_mode = #tpu.pipeline_mode<synchronous>, transform_indices = @transform_2, window_bounds = array<i64: 32, 1>}, {pipeline_mode = #tpu.pipeline_mode<synchronous>, transform_indices = @transform_3, window_bounds = array<i64: 8, 32>}, {pipeline_mode = #tpu.pipeline_mode<synchronous>, transform_indices = @transform_4, window_bounds = array<i64: 8, 1>}, {transform_indices = @transform_5, window_bounds = array<i64: 8, 128>}]} {
    %c0 = arith.constant 0 : index
    %c0_0 = arith.constant 0 : index
    %0 = vector.load %arg1[%c0, %c0_0] : memref<4x128xf32, #tpu.memory_space<vmem>>, vector<4x128xf32>
    %c0_1 = arith.constant 0 : index
    %c0_2 = arith.constant 0 : index
    %1 = vector.load %arg2[%c0_1, %c0_2] : memref<32x4xf32, #tpu.memory_space<vmem>>, vector<32x4xf32>
    %cst = arith.constant dense<0.000000e+00> : vector<32x128xf32>
    %2 = tpu.matmul %1, %0, %cst {dimension_numbers = #tpu.dot_dimension_numbers<[1], [0], [0], [1], [0, 0, 1, 1], [], []>} : vector<32x4xf32>, vector<4x128xf32>, vector<32x128xf32> -> vector<32x128xf32>
    %c0_3 = arith.constant 0 : index
    %c0_4 = arith.constant 0 : index
    %3 = vector.load %arg3[%c0_3, %c0_4] : memref<32x1xf32, #tpu.memory_space<vmem>>, vector<32x1xf32>
    %4 = vector.broadcast %3 : vector<32x1xf32> to vector<32x128xf32>
    %5 = arith.addf %2, %4 : vector<32x128xf32>
    %cst_5 = arith.constant 0.000000e+00 : f32
    %6 = vector.broadcast %cst_5 : f32 to vector<32x128xf32>
    %7 = arith.maximumf %5, %6 : vector<32x128xf32>
    %c0_6 = arith.constant 0 : index
    %c0_7 = arith.constant 0 : index
    %8 = vector.load %arg4[%c0_6, %c0_7] : memref<8x32xf32, #tpu.memory_space<vmem>>, vector<8x32xf32>
    %cst_8 = arith.constant dense<0.000000e+00> : vector<8x128xf32>
    %9 = tpu.matmul %8, %7, %cst_8 {dimension_numbers = #tpu.dot_dimension_numbers<[1], [0], [0], [1], [0, 0, 1, 1], [], []>} : vector<8x32xf32>, vector<32x128xf32>, vector<8x128xf32> -> vector<8x128xf32>
    %c0_9 = arith.constant 0 : index
    %c0_10 = arith.constant 0 : index
    %10 = vector.load %arg5[%c0_9, %c0_10] : memref<8x1xf32, #tpu.memory_space<vmem>>, vector<8x1xf32>
    %11 = vector.broadcast %10 : vector<8x1xf32> to vector<8x128xf32>
    %12 = arith.addf %9, %11 : vector<8x128xf32>
    %cst_11 = arith.constant dense<0xFF800000> : vector<128xf32>
    %13 = vector.multi_reduction <maximumf>, %12, %cst_11 [0] : vector<8x128xf32> to vector<128xf32>
    %14 = vector.shape_cast %13 : vector<128xf32> to vector<1x128xf32>
    %15 = vector.broadcast %14 : vector<1x128xf32> to vector<8x128xf32>
    %16 = arith.subf %12, %15 : vector<8x128xf32>
    %17 = math.exp %16 : vector<8x128xf32>
    %cst_12 = arith.constant dense<0.000000e+00> : vector<128xf32>
    %18 = vector.multi_reduction <add>, %17, %cst_12 [0] : vector<8x128xf32> to vector<128xf32>
    %19 = vector.shape_cast %18 : vector<128xf32> to vector<1x128xf32>
    %20 = vector.broadcast %19 : vector<1x128xf32> to vector<8x128xf32>
    %21 = arith.divf %17, %20 : vector<8x128xf32>
    %c0_13 = arith.constant 0 : index
    %c0_14 = arith.constant 0 : index
    %22 = vector.load %arg6[%c0_13, %c0_14] : memref<8x128xf32, #tpu.memory_space<vmem>>, vector<8x128xf32>
    tpu.vector_store %arg6[%c0_13, %c0_14], %21 {strides = array<i32>} : memref<8x128xf32, #tpu.memory_space<vmem>>, vector<8x128xf32>,
    return
  }
  func.func @transform_0(%arg0: i32) -> (i32, i32) {
    %c0_i32 = arith.constant 0 : i32
    %c0_i32_0 = arith.constant 0 : i32
    return %c0_i32, %arg0 : i32, i32
  }
  func.func @transform_1(%arg0: i32) -> (i32, i32) {
    %c0_i32 = arith.constant 0 : i32
    %c0_i32_0 = arith.constant 0 : i32
    %c0_i32_1 = arith.constant 0 : i32
    return %c0_i32, %c0_i32_0 : i32, i32
  }
  func.func @transform_2(%arg0: i32) -> (i32, i32) {
    %c0_i32 = arith.constant 0 : i32
    %c0_i32_0 = arith.constant 0 : i32
    %c0_i32_1 = arith.constant 0 : i32
    return %c0_i32, %c0_i32_0 : i32, i32
  }
  func.func @transform_3(%arg0: i32) -> (i32, i32) {
    %c0_i32 = arith.constant 0 : i32
    %c0_i32_0 = arith.constant 0 : i32
    %c0_i32_1 = arith.constant 0 : i32
    return %c0_i32, %c0_i32_0 : i32, i32
  }
  func.func @transform_4(%arg0: i32) -> (i32, i32) {
    %c0_i32 = arith.constant 0 : i32
    %c0_i32_0 = arith.constant 0 : i32
    %c0_i32_1 = arith.constant 0 : i32
    return %c0_i32, %c0_i32_0 : i32, i32
  }
  func.func @transform_5(%arg0: i32) -> (i32, i32) {
    %c0_i32 = arith.constant 0 : i32
    %c0_i32_0 = arith.constant 0 : i32
    return %c0_i32, %arg0 : i32, i32
  }
}

</mosaic_0001>

<llo_original>
// kernel: tpu_custom_call.1
$region0: #{tpu_custom_call.1}
  #allocation0 [shape = 'u32[]', space=smem, size = 0x4, offset = 0x4, fixed_abs, tag = 'smem constant byte address 0x4 - core index']
  #allocation1 [shape = 'u32[72,128]{1,0:T(1,128)}', space=vmem, size = 0x9000, scoped, tag = 'internal scratch']
  %s0 = inlined_call_operand.vmem [shape: f32[4,128], index: 0, kind: input, shape index: {}]
  %s1 = inlined_call_operand.vmem [shape: f32[32,4], index: 1, kind: input, shape index: {}]
  %s2 = inlined_call_operand.vmem [shape: f32[32,1], index: 2, kind: input, shape index: {}]
  %s3 = inlined_call_operand.vmem [shape: f32[8,32], index: 3, kind: input, shape index: {}]
  %s4 = inlined_call_operand.vmem [shape: f32[8,1], index: 4, kind: input, shape index: {}]
  %s5 = inlined_call_operand.hbm [shape: f32[8,128], index: 5, kind: output, shape index: {}]
  %s6 = sld [smem:[#allocation0]]
  $region30: #{tpu_custom_call.1} parent=0
    _
  %s8 = ssub.s32 1, %s6
  %s9 = scalar_select 0, %s8, %s6
  $region1: #{tpu_custom_call.1} parent=0
    #allocation2 [shape = 'u8[4096]{0}', space=vmem, size = 0x1000, scoped, tag = 'output window, operand 0, single buffered']
    #allocation3 [shape = 's32[1]{0}', space=sflag, size = 0x4, scoped, tag = 'scoped memory for tpu_custom_call.1']
    %10 = vsyncpa [#allocation3], 0
    // Predicated region
    $region2: #{tpu_custom_call.1} parent=1 // pred_check
      _
    $region3: #{tpu_custom_call.1} parent=1 // pred_check_branch
      %12 = sbr.rel (0) target = $region5
    $region4: #{tpu_custom_call.1} parent=1 // pred_region
      _
    $region5: #{tpu_custom_call.1} parent=1 // pred_fallthru
      _
    // Predicated region
    $region6: #{tpu_custom_call.1} parent=1 // pred_check
      _
    $region7: #{tpu_custom_call.1} parent=1 // pred_check_branch
      %14 = sbr.rel (0) target = $region9
    $region8: #{tpu_custom_call.1} parent=1 // pred_region
      _
    $region9: #{tpu_custom_call.1} parent=1 // pred_fallthru
      _
    // Predicated region
    $region10: #{tpu_custom_call.1} parent=1 // pred_check
      _
    $region11: #{tpu_custom_call.1} parent=1 // pred_check_branch
      %16 = sbr.rel (0) target = $region13
    $region12: #{tpu_custom_call.1} parent=1 // pred_region
      _
    $region13: #{tpu_custom_call.1} parent=1 // pred_fallthru
      _
    // Predicated region
    $region14: #{tpu_custom_call.1} parent=1 // pred_check
      _
    $region15: #{tpu_custom_call.1} parent=1 // pred_check_branch
      %18 = sbr.rel (0) target = $region17
    $region16: #{tpu_custom_call.1} parent=1 // pred_region
      _
    $region17: #{tpu_custom_call.1} parent=1 // pred_fallthru
      _
    // Predicated region
    $region18: #{tpu_custom_call.1} parent=1 // pred_check
      _
    $region19: #{tpu_custom_call.1} parent=1 // pred_check_branch
      %20 = sbr.rel (0) target = $region21
    $region20: #{tpu_custom_call.1} parent=1 // pred_region
      _
    $region21: #{tpu_custom_call.1} parent=1 // pred_fallthru
      _
    %v21 = vld [vmem:[%s0] sm:$0xf]
    %v22 = vld [vmem:[%s1] sm:$0xff]
    %v23 = vld [vmem:[%s1 + $0x8] sm:$0xff]
    %v24 = vld [vmem:[%s1 + $0x10] sm:$0xff]
    %v25 = vld [vmem:[%s1 + $0x18] sm:$0xff]
    %v26 = vld [vmem:[%s2] sm:$0xff]
    %v27 = vld [vmem:[%s2 + $0x8] sm:$0xff]
    %v28 = vld [vmem:[%s2 + $0x10] sm:$0xff]
    %v29 = vld [vmem:[%s2 + $0x18] sm:$0xff]
    %31 = vset.pattern.permute.xlu0 0
    %32 = vperm.xlu0 %31, %v26
    %v33 = vpop.permute.xlu0 %32
    %36 = vset.pattern.permute.xlu0 0
    %37 = vperm.xlu0 %36, %v27
    %v38 = vpop.permute.xlu0 %37
    %41 = vset.pattern.permute.xlu0 0
    %42 = vperm.xlu0 %41, %v28
    %v43 = vpop.permute.xlu0 %42
    %46 = vset.pattern.permute.xlu0 0
    %47 = vperm.xlu0 %46, %v29
    %v48 = vpop.permute.xlu0 %47
    %vm50 = vcmask 31744
    %v52 = vsel %vm50, %v22, 0
    %v55 = vsel %vm50, %v23, 0
    %v58 = vsel %vm50, %v24, 0
    %v61 = vsel %vm50, %v25, 0
    %vm63 = vcmask 1043456
    %v65 = vsel %vm63, %v21, 0
    %67 = vmatpush.msra.mxu0 0.0
    %68 = vmatpush.msra.mxu0 0.0
    %69 = vmatpush.msra.mxu0 0.0
    %70 = vmatpush.msra.mxu0 0.0
    %71 = vmatpush.msra.mxu0 0.0
    %72 = vmatpush.msra.mxu0 0.0
    %73 = vmatpush.msra.mxu0 0.0
    %74 = vmatpush.msra.mxu0 0.0
    %75 = vmatpush.msra.mxu0 0.0
    %76 = vmatpush.msra.mxu0 0.0
    %77 = vmatpush.msra.mxu0 0.0
    %78 = vmatpush.msra.mxu0 0.0
    %79 = vmatpush.msra.mxu0 0.0
    %80 = vmatpush.msra.mxu0 0.0
    %81 = vmatpush.msra.mxu0 0.0
    %82 = vmatpush.msra.mxu0 %v65
    %83 = vmatmul.f32.gmra.mxu0 %v52
    %v84 = vpop.f32.mrf.mxu0
    %v85 = vadd.f32 %v33, %v84
    %86 = vmatmul.f32.gmra.mxu0 %v55
    %v87 = vpop.f32.mrf.mxu0
    %v88 = vadd.f32 %v38, %v87
    %89 = vmatmul.f32.gmra.mxu0 %v58
    %v90 = vpop.f32.mrf.mxu0
    %v91 = vadd.f32 %v43, %v90
    %92 = vmatmul.f32.gmra.mxu0 %v61
    %v93 = vpop.f32.mrf.mxu0
    %v94 = vadd.f32 %v48, %v93
    %95 = vdwg.mxu0
    %v96 = vmax.f32 %v85, 0.0
    %v97 = vmax.f32 %v88, 0.0
    %v98 = vmax.f32 %v91, 0.0
    %v99 = vmax.f32 %v94, 0.0
    %v100 = vld [vmem:[%s3] sm:$0xff]
    %v101 = vld [vmem:[%s4] sm:$0xff]
    %103 = vset.pattern.permute.xlu0 0
    %104 = vperm.xlu0 %103, %v101
    %v105 = vpop.permute.xlu0 %104
    %vm107 = vcmask 261120
    %v109 = vsel %vm107, %v100, 0
    %111 = vmatpush.msra.mxu0 0.0
    %112 = vmatpush.msra.mxu0 0.0
    %113 = vmatpush.msra.mxu0 0.0
    %114 = vmatpush.msra.mxu0 0.0
    %115 = vmatpush.msra.mxu0 0.0
    %116 = vmatpush.msra.mxu0 0.0
    %117 = vmatpush.msra.mxu0 0.0
    %118 = vmatpush.msra.mxu0 0.0
    %119 = vmatpush.msra.mxu0 0.0
    %120 = vmatpush.msra.mxu0 0.0
    %121 = vmatpush.msra.mxu0 0.0
    %122 = vmatpush.msra.mxu0 0.0
    %123 = vmatpush.msra.mxu0 %v99
    %124 = vmatpush.msra.mxu0 %v98
    %125 = vmatpush.msra.mxu0 %v97
    %126 = vmatpush.msra.mxu0 %v96
    %127 = vmatmul.f32.gmra.mxu0 %v109
    %v128 = vpop.f32.mrf.mxu0
    %v129 = vadd.f32 %v105, %v128
    %130 = vdwg.mxu0
    %v131 = vrot.slane %v129, 4
    %v132 = vmax.f32 %v129, %v131
    %v133 = vrot.slane %v132, 2
    %v134 = vmax.f32 %v132, %v133
    %v135 = vrot.slane %v134, 1
    %v136 = vmax.f32 %v134, %v135
    %v137 = vsub.f32 %v129, %v136
    %v138 = vmul.f32 %v137, 1.442695
    %v139 = vpow.pop %v138
    %v140 = vrot.slane %v139, 4
    %v141 = vadd.f32 %v139, %v140
    %v142 = vrot.slane %v141, 2
    %v143 = vadd.f32 %v141, %v142
    %v144 = vrot.slane %v143, 1
    %v145 = vadd.f32 %v143, %v144
    %v146 = vrcp.pop %v145
    %v147 = vmul.f32 %v145, %v146
    %v148 = vsub.f32 1.0, %v147
    %v149 = vmul.f32 %v146, %v148
    %v150 = vadd.f32 %v146, %v149
    %vm151 = vweird.f32 %v145
    %vm152 = vweird.f32 %v146
    %vm153 = vmor %vm151, %vm152
    %v154 = vsel %vm153, %v146, %v150
    %v155 = vand.u32 2147483647, %v145
    %vm156 = vcmp.eq.f32.partialorder %v155, 8.507059e+37
    %v157 = vand.u32 %v145, 2147483648
    %v158 = vor.u32 1.1754944e-38, %v157
    %v159 = vsel %vm156, %v158, %v154
    %v160 = vmul.f32 %v139, %v159
    %161 = vst [vmem:[#allocation2] sm:$0xff] %v160
    // Predicated region
    $region22: #{tpu_custom_call.1} parent=1 // pred_check
      _
    $region23: #{tpu_custom_call.1} parent=1 // pred_check_branch
      %163 = sbr.rel (0) target = $region25
    $region24: #{tpu_custom_call.1} parent=1 // pred_region
      %165 = vsyncadd [#allocation3], 0
      %s167 = sshll.u32 [#allocation2], 4
      %s168 = int_to_ptr.vmem [resolvable:$true] %s167
      %s169 = sshll.u32 %s5, 4
      %s170 = int_to_ptr.hbm [resolvable:$true] %s169
      %172 = dma.vmem_to_hbm [thread:$0]  %s168, 128, %s170, [#allocation3]
    $region25: #{tpu_custom_call.1} parent=1 // pred_fallthru
      _
    // Predicated region
    $region26: #{tpu_custom_call.1} parent=1 // pred_check
      _
    $region27: #{tpu_custom_call.1} parent=1 // pred_check_branch
      %174 = sbr.rel (0) target = $region29
    $region28: #{tpu_custom_call.1} parent=1 // pred_region
      %176 = dma.done [#allocation3], 128
    $region29: #{tpu_custom_call.1} parent=1 // pred_fallthru
      _
    %177 = vsyncpa [#allocation3], 1

</llo_original>
